<compile_context>
chip_gen: v5e
topology: v5e:2x2
jax: 0.10.0
libtpu: 0.0.40
codegen_flags: <defaults>
</compile_context>

<pallas_src>
import functools

import jax
import jax.numpy as jnp
import numpy as np
from jax import lax
from jax.experimental import pallas as pl
from jax.experimental.pallas import tpu as pltpu


def _round_up(x, m):
    return (x + m - 1) // m * m


# ----------------------------- Pallas kernel -------------------------------

def _make_lstm_kernel(aligned, unroll):
    """Builds the whole-sequence LSTM kernel for one batch tile."""

    def kernel(x_ref, wx_ref, wh_ref, b_ref, out_ref, gx_ref):
        L, bt, H = x_ref.shape
        G = wx_ref.shape[1]                 # 4 * D
        D = G // 4

        # --- Hoisted input projection: ONE big MXU matmul over all timesteps.
        #     (bf16 operands, f32 accumulate; bias added once, not per step.)
        x_all = x_ref[...].reshape(L * bt, H)
        gx = jnp.dot(x_all, wx_ref[...], preferred_element_type=jnp.float32)
        gx_ref[...] = (gx + b_ref[...]).reshape(L, bt, G)      # f32 VMEM scratch

        wh = wh_ref[...]                                        # resident bf16

        if aligned:
            # D % 128 == 0: lane-aligned gate bands, narrow (bt, D) state.
            def step(t, carry):
                h, c = carry                                    # (bt, D) f32
                gates = gx_ref[t] + jnp.dot(
                    h.astype(wh.dtype), wh, preferred_element_type=jnp.float32)
                i_g = jax.nn.sigmoid(gates[:, 0 * D:1 * D])
                f_g = jax.nn.sigmoid(gates[:, 1 * D:2 * D])
                g_g = jnp.tanh(gates[:, 2 * D:3 * D])
                o_g = jax.nn.sigmoid(gates[:, 3 * D:4 * D])
                c_new = f_g * c + i_g * g_g
                h_new = o_g * jnp.tanh(c_new)                   # narrow tanh
                return h_new, c_new

            carry0 = (jnp.zeros((bt, D), jnp.float32),
                      jnp.zeros((bt, D), jnp.float32))
        else:
            # D < 128 fallback: wide-lane scheme (avoids sub-128 lane slices).
            # wh is zero-padded to (4D, 4D) in the wrapper, so the garbage
            # lanes [D, 4D) of the wide state contribute exactly zero.
            lane = lax.broadcasted_iota(jnp.int32, (bt, G), 1)
            is_g = (lane >= 2 * D) & (lane < 3 * D)             # tanh band

            def step(t, carry):
                h, c = carry                                    # (bt, 4D) wide
                gates = gx_ref[t] + jnp.dot(
                    h.astype(wh.dtype), wh, preferred_element_type=jnp.float32)
                act = jnp.where(is_g, jnp.tanh(gates), jax.nn.sigmoid(gates))
                # Align f / g / o bands with lanes [0, D) via XLU rolls.
                f_al = pltpu.roll(act, 3 * D, axis=1)
                g_al = pltpu.roll(act, 2 * D, axis=1)
                o_al = pltpu.roll(act, 1 * D, axis=1)
                c_new = f_al * c + act * g_al                   # lanes [0,D): f*c + i*g
                h_new = o_al * jnp.tanh(c_new)                  # lanes [0,D): o*tanh(c)
                return h_new, c_new

            carry0 = (jnp.zeros((bt, G), jnp.float32),
                      jnp.zeros((bt, G), jnp.float32))

        h_last, _ = lax.fori_loop(0, L, step, carry0, unroll=unroll)
        out_ref[...] = h_last.astype(out_ref.dtype)

    return kernel


def _pick_block_b(b_sub, seq_len, h_in, gate_dim):
    """Batch tile size under an explicit VMEM budget (portable v5e/v6e/v7x)."""
    budget = 24 * 1024 * 1024          # stay well under the 32 MiB scoped default

    def vmem_bytes(blk):
        return (seq_len * blk * gate_dim * 4          # f32 gates scratch
                + 2 * seq_len * blk * h_in * 2        # double-buffered bf16 xs tile
                + (h_in + gate_dim) * gate_dim * 2    # weights (bf16, upper bound)
                + 2 * blk * gate_dim * 4)             # output + carries

    blk = max(8, min(b_sub, 256))
    blk = (blk // 8) * 8
    while blk > 8 and vmem_bytes(blk) > budget:
        blk //= 2
    # Give the v7x megacore at least two batch tiles when the batch allows it.
    if b_sub // blk < 2 and b_sub >= 16:
        blk = max(8, blk // 2)
    return blk


def lstm_last_pallas(xs, w_ih, w_hh, b_ih, b_hh):
    """xs: (L, B, H) time-major input.  Returns h_L: (B, D) float32."""
    L, B, H = xs.shape
    G, D = w_hh.shape                   # w_hh: (4D, D)
    assert G == 4 * D and w_ih.shape == (G, H)
    aligned = (D % 128 == 0)

    # bf16 MXU operands; f32 accumulate + f32 gate/state math inside the kernel.
    wx = w_ih.T.astype(jnp.bfloat16)                                  # (H, 4D)
    if aligned:
        wh = w_hh.T.astype(jnp.bfloat16)                              # (D, 4D)
    else:
        # Zero-pad recurrent weights: wide-state garbage lanes hit zero rows.
        wh = jnp.zeros((G, G), jnp.float32).at[:D, :].set(
            w_hh.T.astype(jnp.float32)).astype(jnp.bfloat16)          # (4D, 4D)
    bias = (b_ih + b_hh).reshape(1, G).astype(jnp.float32)
    xs = xs.astype(jnp.bfloat16)

    # Pad batch to the sublane multiple and tile it on a "parallel" grid axis.
    B_sub = _round_up(B, 8)
    block_b = _pick_block_b(B_sub, L, H, G)
    B_pad = _round_up(B_sub, block_b)
    if B_pad != B:
        xs = jnp.pad(xs, ((0, 0), (0, B_pad - B), (0, 0)))

    out_dim = D if aligned else G
    unroll = True if L <= 16 else 4
    kernel = _make_lstm_kernel(aligned, unroll)

    k_rec = D if aligned else G
    cost = pl.CostEstimate(
        flops=2 * L * B_pad * (H + k_rec) * G,
        transcendentals=L * B_pad * 5 * D,
        bytes_accessed=(xs.size * 2 + wx.size * 2 + wh.size * 2
                        + bias.size * 4 + B_pad * out_dim * 4),
    )

    out = pl.pallas_call(
        kernel,
        out_shape=jax.ShapeDtypeStruct((B_pad, out_dim), jnp.float32),
        grid_spec=pltpu.PrefetchScalarGridSpec(
            num_scalar_prefetch=0,
            grid=(B_pad // block_b,),
            in_specs=[
                pl.BlockSpec((L, block_b, H), lambda b: (0, b, 0)),   # full sequence
                pl.BlockSpec((H, G), lambda b: (0, 0)),               # input weights
                pl.BlockSpec(wh.shape, lambda b: (0, 0)),             # recurrent weights
                pl.BlockSpec((1, G), lambda b: (0, 0)),               # bias
            ],
            out_specs=pl.BlockSpec((block_b, out_dim), lambda b: (b, 0)),
            scratch_shapes=[pltpu.VMEM((L, block_b, G), jnp.float32)],  # gates_x
        ),
        compiler_params=pltpu.CompilerParams(
            dimension_semantics=("parallel",),   # batch tiles are independent
        ),
        cost_estimate=cost,
    )(xs, wx, wh, bias)

    if aligned:
        return out[:B]               # lane-dense (B, D) write, no extra slice copy
    return out[:B, :D]               # wide store kept only for D < 128


# --------------------------- module-level forward ---------------------------

def lstm_pooling_forward(all_hidden_states, params, num_layers, hidden_size):
    """Exact reproduction of LSTMPooling.forward.

    all_hidden_states: tuple of (num_layers + 1) arrays, each (B, S, H).
    Returns (B, hiddendim_lstm).
    """
    # torch.stack([hs[layer][:, 0].squeeze() for layer in 1..L], dim=-1) -> (B, H, L)
    # then .view(-1, L, H) is a *raw* reshape (bug-compatible with PyTorch).
    cls = jnp.stack(
        [all_hidden_states[layer_i][:, 0] for layer_i in range(1, num_layers + 1)],
        axis=-1,
    )                                                           # (B, H, L)
    hidden_states = cls.reshape(-1, num_layers, hidden_size)    # (B, L, H)
    # TODO(synk): the time-major transpose costs one extra HBM round-trip of xs;
    # it could be folded into the hoisted input projection if needed.
    xs = jnp.transpose(hidden_states, (1, 0, 2))                # (L, B, H)
    return lstm_last_pallas(
        xs, params["w_ih"], params["w_hh"], params["b_ih"], params["b_hh"]
    )


# ------------------------------ reference (JAX) -----------------------------

def lstm_pooling_reference(all_hidden_states, params, num_layers, hidden_size,
                           mxu_dtype=jnp.float32):
    """Plain-JAX reference.  mxu_dtype=bfloat16 mirrors the kernel's matmul-input
    precision (f32 accumulate + f32 gate/state math in both cases)."""
    cls = jnp.stack(
        [all_hidden_states[layer_i][:, 0] for layer_i in range(1, num_layers + 1)],
        axis=-1,
    )
    hidden_states = cls.reshape(-1, num_layers, hidden_size)    # (B, L, H)
    B = hidden_states.shape[0]
    D = params["w_hh"].shape[1]
    wx = params["w_ih"].T.astype(mxu_dtype)
    wh = params["w_hh"].T.astype(mxu_dtype)
    b = (params["b_ih"] + params["b_hh"]).astype(jnp.float32)
    xs = jnp.transpose(hidden_states, (1, 0, 2)).astype(mxu_dtype)   # (L, B, H)

    def step(carry, x_t):
        h, c = carry
        gates = (jnp.dot(x_t, wx, preferred_element_type=jnp.float32) + b
                 + jnp.dot(h.astype(mxu_dtype), wh,
                           preferred_element_type=jnp.float32))
        i_g = jax.nn.sigmoid(gates[:, 0 * D:1 * D])
        f_g = jax.nn.sigmoid(gates[:, 1 * D:2 * D])
        g_g = jnp.tanh(gates[:, 2 * D:3 * D])
        o_g = jax.nn.sigmoid(gates[:, 3 * D:4 * D])
        c_new = f_g * c + i_g * g_g
        h_new = o_g * jnp.tanh(c_new)
        return (h_new, c_new), None

    h0 = jnp.zeros((B, D), jnp.float32)
    c0 = jnp.zeros((B, D), jnp.float32)
    (h_last, _), _ = lax.scan(step, (h0, c0), xs)
    return h_last


# ----------------------------------- main -----------------------------------

if __name__ == "__main__":
    num_layers = 8          # number of transformer hidden layers (== LSTM seq len)
    hidden_size = 32        # transformer hidden size (== LSTM input size)
    hiddendim_lstm = 32     # LSTM hidden size
    batch = 2
    seq = 8                 # token sequence length (only CLS token [:, 0] is used)

    key = jax.random.PRNGKey(0)
    k_hs, k_wih, k_whh, k_bih, k_bhh = jax.random.split(key, 5)

    # all_hidden_states: (num_layers + 1) tensors of shape (B, S, H)
    hs_all = jax.random.normal(
        k_hs, (num_layers + 1, batch, seq, hidden_size), dtype=jnp.float32
    )
    all_hidden_states = tuple(hs_all[i] for i in range(num_layers + 1))

    # Deterministic LSTM parameters (PyTorch-style uniform(-1/sqrt(D), 1/sqrt(D)))
    bound = 1.0 / np.sqrt(hiddendim_lstm)
    params = {
        "w_ih": jax.random.uniform(k_wih, (4 * hiddendim_lstm, hidden_size),
                                   jnp.float32, -bound, bound),
        "w_hh": jax.random.uniform(k_whh, (4 * hiddendim_lstm, hiddendim_lstm),
                                   jnp.float32, -bound, bound),
        "b_ih": jax.random.uniform(k_bih, (4 * hiddendim_lstm,),
                                   jnp.float32, -bound, bound),
        "b_hh": jax.random.uniform(k_bhh, (4 * hiddendim_lstm,),
                                   jnp.float32, -bound, bound),
    }

    out = lstm_pooling_forward(all_hidden_states, params, num_layers, hidden_size)
    out = jax.block_until_ready(out)
    assert out.shape == (batch, hiddendim_lstm), out.shape

    # Tight check against a reference with the SAME matmul-input precision
    # (bf16 MXU operands, f32 accumulate + f32 gate/state math).
    ref_bf16 = jax.block_until_ready(
        lstm_pooling_reference(all_hidden_states, params, num_layers, hidden_size,
                               mxu_dtype=jnp.bfloat16))
    np.testing.assert_allclose(np.asarray(out), np.asarray(ref_bf16),
                               rtol=2e-4, atol=2e-4)

    # Loose check against the pure-f32 reference (PyTorch semantics); tolerance
    # absorbs the deliberate bf16 cast of the MXU operands.
    ref_f32 = jax.block_until_ready(
        lstm_pooling_reference(all_hidden_states, params, num_layers, hidden_size,
                               mxu_dtype=jnp.float32))
    np.testing.assert_allclose(np.asarray(out), np.asarray(ref_f32),
                               rtol=3e-2, atol=3e-2)

    print("KERNEL_OK")
</pallas_src>

<mosaic_0001>
module attributes {stable_mosaic.version = 11 : i64} {
  func.func @kernel(%arg0: i32, %arg1: memref<8x8x32xbf16, #tpu.memory_space<vmem>>, %arg2: memref<32x128xbf16, #tpu.memory_space<vmem>>, %arg3: memref<128x128xbf16, #tpu.memory_space<vmem>>, %arg4: memref<1x128xf32, #tpu.memory_space<vmem>>, %arg5: memref<8x128xf32, #tpu.memory_space<vmem>>, %arg6: memref<8x8x128xf32, #tpu.memory_space<vmem>>) attributes {dimension_semantics = [#tpu.dimension_semantics<parallel>], iteration_bounds = array<i64: 1>, scalar_prefetch = 0 : i64, scratch_operands = 1 : i64, tpu.core_type = #tpu.core_type<tc>, window_params = [{transform_indices = @transform_0, window_bounds = array<i64: 8, 8, 32>}, {pipeline_mode = #tpu.pipeline_mode<synchronous>, transform_indices = @transform_1, window_bounds = array<i64: 32, 128>}, {pipeline_mode = #tpu.pipeline_mode<synchronous>, transform_indices = @transform_2, window_bounds = array<i64: 128, 128>}, {pipeline_mode = #tpu.pipeline_mode<synchronous>, transform_indices = @transform_3, window_bounds = array<i64: 1, 128>}, {transform_indices = @transform_4, window_bounds = array<i64: 8, 128>}]} {
    %c0 = arith.constant 0 : index
    %c0_0 = arith.constant 0 : index
    %c0_1 = arith.constant 0 : index
    %0 = vector.load %arg1[%c0, %c0_0, %c0_1] : memref<8x8x32xbf16, #tpu.memory_space<vmem>>, vector<8x8x32xbf16>
    %1 = vector.shape_cast %0 : vector<8x8x32xbf16> to vector<64x32xbf16>
    %c0_2 = arith.constant 0 : index
    %c0_3 = arith.constant 0 : index
    %2 = vector.load %arg2[%c0_2, %c0_3] : memref<32x128xbf16, #tpu.memory_space<vmem>>, vector<32x128xbf16>
    %cst = arith.constant dense<0.000000e+00> : vector<64x128xf32>
    %3 = tpu.matmul %1, %2, %cst {dimension_numbers = #tpu.dot_dimension_numbers<[1], [0], [0], [1], [0, 0, 1, 1], [], []>} : vector<64x32xbf16>, vector<32x128xbf16>, vector<64x128xf32> -> vector<64x128xf32>
    %c0_4 = arith.constant 0 : index
    %c0_5 = arith.constant 0 : index
    %4 = vector.load %arg4[%c0_4, %c0_5] : memref<1x128xf32, #tpu.memory_space<vmem>>, vector<1x128xf32>
    %5 = vector.broadcast %4 : vector<1x128xf32> to vector<64x128xf32>
    %6 = arith.addf %3, %5 : vector<64x128xf32>
    %7 = vector.shape_cast %6 : vector<64x128xf32> to vector<8x8x128xf32>
    %c0_6 = arith.constant 0 : index
    %c0_7 = arith.constant 0 : index
    %c0_8 = arith.constant 0 : index
    %8 = vector.load %arg6[%c0_6, %c0_7, %c0_8] : memref<8x8x128xf32, #tpu.memory_space<vmem>>, vector<8x8x128xf32>
    tpu.vector_store %arg6[%c0_6, %c0_7, %c0_8], %7 {strides = array<i32>} : memref<8x8x128xf32, #tpu.memory_space<vmem>>, vector<8x8x128xf32>,
    %c0_9 = arith.constant 0 : index
    %c0_10 = arith.constant 0 : index
    %9 = vector.load %arg3[%c0_9, %c0_10] : memref<128x128xbf16, #tpu.memory_space<vmem>>, vector<128x128xbf16>
    %10 = tpu.iota {dimensions = array<i32: 1>} : vector<8x128xi32>
    %c64_i32 = arith.constant 64 : i32
    %11 = vector.broadcast %c64_i32 : i32 to vector<8x128xi32>
    %12 = arith.cmpi sge, %10, %11 : vector<8x128xi32>
    %c96_i32 = arith.constant 96 : i32
    %13 = vector.broadcast %c96_i32 : i32 to vector<8x128xi32>
    %14 = arith.cmpi slt, %10, %13 : vector<8x128xi32>
    %15 = arith.andi %12, %14 : vector<8x128xi1>
    %cst_11 = arith.constant 0.000000e+00 : f32
    %16 = vector.broadcast %cst_11 : f32 to vector<8x128xf32>
    %cst_12 = arith.constant 0.000000e+00 : f32
    %17 = vector.broadcast %cst_12 : f32 to vector<8x128xf32>
    %c0_i32 = arith.constant 0 : i32
    %18 = arith.index_cast %c0_i32 : i32 to index
    %c0_13 = arith.constant 0 : index
    %c0_14 = arith.constant 0 : index
    %19 = vector.load %arg6[%18, %c0_13, %c0_14] : memref<8x8x128xf32, #tpu.memory_space<vmem>>, vector<1x8x128xf32>
    %20 = vector.shape_cast %19 : vector<1x8x128xf32> to vector<8x128xf32>
    %21 = arith.truncf %16 : vector<8x128xf32> to vector<8x128xbf16>
    %cst_15 = arith.constant dense<0.000000e+00> : vector<8x128xf32>
    %22 = tpu.matmul %21, %9, %cst_15 {dimension_numbers = #tpu.dot_dimension_numbers<[1], [0], [0], [1], [0, 0, 1, 1], [], []>} : vector<8x128xbf16>, vector<128x128xbf16>, vector<8x128xf32> -> vector<8x128xf32>
    %23 = arith.addf %20, %22 : vector<8x128xf32>
    %24 = math.tanh %23 : vector<8x128xf32>
    %25 = arith.negf %23 : vector<8x128xf32>
    %26 = math.exp %25 : vector<8x128xf32>
    %cst_16 = arith.constant 1.000000e+00 : f32
    %27 = vector.broadcast %cst_16 : f32 to vector<8x128xf32>
    %28 = arith.addf %27, %26 : vector<8x128xf32>
    %29 = arith.divf %27, %28 : vector<8x128xf32>
    %30 = arith.select %15, %24, %29 : vector<8x128xi1>, vector<8x128xf32>
    %c96_i32_17 = arith.constant 96 : i32
    %31 = tpu.dynamic_rotate %30 by %c96_i32_17 dim 1 : vector<8x128xf32>, i32 -> vector<8x128xf32>
    %c64_i32_18 = arith.constant 64 : i32
    %32 = tpu.dynamic_rotate %30 by %c64_i32_18 dim 1 : vector<8x128xf32>, i32 -> vector<8x128xf32>
    %c32_i32 = arith.constant 32 : i32
    %33 = tpu.dynamic_rotate %30 by %c32_i32 dim 1 : vector<8x128xf32>, i32 -> vector<8x128xf32>
    %34 = arith.mulf %31, %17 : vector<8x128xf32>
    %35 = arith.mulf %30, %32 : vector<8x128xf32>
    %36 = arith.addf %34, %35 : vector<8x128xf32>
    %37 = math.tanh %36 : vector<8x128xf32>
    %38 = arith.mulf %33, %37 : vector<8x128xf32>
    %c1_i32 = arith.constant 1 : i32
    %39 = arith.index_cast %c1_i32 : i32 to index
    %c0_19 = arith.constant 0 : index
    %c0_20 = arith.constant 0 : index
    %40 = vector.load %arg6[%39, %c0_19, %c0_20] : memref<8x8x128xf32, #tpu.memory_space<vmem>>, vector<1x8x128xf32>
    %41 = vector.shape_cast %40 : vector<1x8x128xf32> to vector<8x128xf32>
    %42 = arith.truncf %38 : vector<8x128xf32> to vector<8x128xbf16>
    %cst_21 = arith.constant dense<0.000000e+00> : vector<8x128xf32>
    %43 = tpu.matmul %42, %9, %cst_21 {dimension_numbers = #tpu.dot_dimension_numbers<[1], [0], [0], [1], [0, 0, 1, 1], [], []>} : vector<8x128xbf16>, vector<128x128xbf16>, vector<8x128xf32> -> vector<8x128xf32>
    %44 = arith.addf %41, %43 : vector<8x128xf32>
    %45 = math.tanh %44 : vector<8x128xf32>
    %46 = arith.negf %44 : vector<8x128xf32>
    %47 = math.exp %46 : vector<8x128xf32>
    %cst_22 = arith.constant 1.000000e+00 : f32
    %48 = vector.broadcast %cst_22 : f32 to vector<8x128xf32>
    %49 = arith.addf %48, %47 : vector<8x128xf32>
    %50 = arith.divf %48, %49 : vector<8x128xf32>
    %51 = arith.select %15, %45, %50 : vector<8x128xi1>, vector<8x128xf32>
    %c96_i32_23 = arith.constant 96 : i32
    %52 = tpu.dynamic_rotate %51 by %c96_i32_23 dim 1 : vector<8x128xf32>, i32 -> vector<8x128xf32>
    %c64_i32_24 = arith.constant 64 : i32
    %53 = tpu.dynamic_rotate %51 by %c64_i32_24 dim 1 : vector<8x128xf32>, i32 -> vector<8x128xf32>
    %c32_i32_25 = arith.constant 32 : i32
    %54 = tpu.dynamic_rotate %51 by %c32_i32_25 dim 1 : vector<8x128xf32>, i32 -> vector<8x128xf32>
    %55 = arith.mulf %52, %36 : vector<8x128xf32>
    %56 = arith.mulf %51, %53 : vector<8x128xf32>
    %57 = arith.addf %55, %56 : vector<8x128xf32>
    %58 = math.tanh %57 : vector<8x128xf32>
    %59 = arith.mulf %54, %58 : vector<8x128xf32>
    %c2_i32 = arith.constant 2 : i32
    %60 = arith.index_cast %c2_i32 : i32 to index
    %c0_26 = arith.constant 0 : index
    %c0_27 = arith.constant 0 : index
    %61 = vector.load %arg6[%60, %c0_26, %c0_27] : memref<8x8x128xf32, #tpu.memory_space<vmem>>, vector<1x8x128xf32>
    %62 = vector.shape_cast %61 : vector<1x8x128xf32> to vector<8x128xf32>
    %63 = arith.truncf %59 : vector<8x128xf32> to vector<8x128xbf16>
    %cst_28 = arith.constant dense<0.000000e+00> : vector<8x128xf32>
    %64 = tpu.matmul %63, %9, %cst_28 {dimension_numbers = #tpu.dot_dimension_numbers<[1], [0], [0], [1], [0, 0, 1, 1], [], []>} : vector<8x128xbf16>, vector<128x128xbf16>, vector<8x128xf32> -> vector<8x128xf32>
    %65 = arith.addf %62, %64 : vector<8x128xf32>
    %66 = math.tanh %65 : vector<8x128xf32>
    %67 = arith.negf %65 : vector<8x128xf32>
    %68 = math.exp %67 : vector<8x128xf32>
    %cst_29 = arith.constant 1.000000e+00 : f32
    %69 = vector.broadcast %cst_29 : f32 to vector<8x128xf32>
    %70 = arith.addf %69, %68 : vector<8x128xf32>
    %71 = arith.divf %69, %70 : vector<8x128xf32>
    %72 = arith.select %15, %66, %71 : vector<8x128xi1>, vector<8x128xf32>
    %c96_i32_30 = arith.constant 96 : i32
    %73 = tpu.dynamic_rotate %72 by %c96_i32_30 dim 1 : vector<8x128xf32>, i32 -> vector<8x128xf32>
    %c64_i32_31 = arith.constant 64 : i32
    %74 = tpu.dynamic_rotate %72 by %c64_i32_31 dim 1 : vector<8x128xf32>, i32 -> vector<8x128xf32>
    %c32_i32_32 = arith.constant 32 : i32
    %75 = tpu.dynamic_rotate %72 by %c32_i32_32 dim 1 : vector<8x128xf32>, i32 -> vector<8x128xf32>
    %76 = arith.mulf %73, %57 : vector<8x128xf32>
    %77 = arith.mulf %72, %74 : vector<8x128xf32>
    %78 = arith.addf %76, %77 : vector<8x128xf32>
    %79 = math.tanh %78 : vector<8x128xf32>
    %80 = arith.mulf %75, %79 : vector<8x128xf32>
    %c3_i32 = arith.constant 3 : i32
    %81 = arith.index_cast %c3_i32 : i32 to index
    %c0_33 = arith.constant 0 : index
    %c0_34 = arith.constant 0 : index
    %82 = vector.load %arg6[%81, %c0_33, %c0_34] : memref<8x8x128xf32, #tpu.memory_space<vmem>>, vector<1x8x128xf32>
    %83 = vector.shape_cast %82 : vector<1x8x128xf32> to vector<8x128xf32>
    %84 = arith.truncf %80 : vector<8x128xf32> to vector<8x128xbf16>
    %cst_35 = arith.constant dense<0.000000e+00> : vector<8x128xf32>
    %85 = tpu.matmul %84, %9, %cst_35 {dimension_numbers = #tpu.dot_dimension_numbers<[1], [0], [0], [1], [0, 0, 1, 1], [], []>} : vector<8x128xbf16>, vector<128x128xbf16>, vector<8x128xf32> -> vector<8x128xf32>
    %86 = arith.addf %83, %85 : vector<8x128xf32>
    %87 = math.tanh %86 : vector<8x128xf32>
    %88 = arith.negf %86 : vector<8x128xf32>
    %89 = math.exp %88 : vector<8x128xf32>
    %cst_36 = arith.constant 1.000000e+00 : f32
    %90 = vector.broadcast %cst_36 : f32 to vector<8x128xf32>
    %91 = arith.addf %90, %89 : vector<8x128xf32>
    %92 = arith.divf %90, %91 : vector<8x128xf32>
    %93 = arith.select %15, %87, %92 : vector<8x128xi1>, vector<8x128xf32>
    %c96_i32_37 = arith.constant 96 : i32
    %94 = tpu.dynamic_rotate %93 by %c96_i32_37 dim 1 : vector<8x128xf32>, i32 -> vector<8x128xf32>
    %c64_i32_38 = arith.constant 64 : i32
    %95 = tpu.dynamic_rotate %93 by %c64_i32_38 dim 1 : vector<8x128xf32>, i32 -> vector<8x128xf32>
    %c32_i32_39 = arith.constant 32 : i32
    %96 = tpu.dynamic_rotate %93 by %c32_i32_39 dim 1 : vector<8x128xf32>, i32 -> vector<8x128xf32>
    %97 = arith.mulf %94, %78 : vector<8x128xf32>
    %98 = arith.mulf %93, %95 : vector<8x128xf32>
    %99 = arith.addf %97, %98 : vector<8x128xf32>
    %100 = math.tanh %99 : vector<8x128xf32>
    %101 = arith.mulf %96, %100 : vector<8x128xf32>
    %c4_i32 = arith.constant 4 : i32
    %102 = arith.index_cast %c4_i32 : i32 to index
    %c0_40 = arith.constant 0 : index
    %c0_41 = arith.constant 0 : index
    %103 = vector.load %arg6[%102, %c0_40, %c0_41] : memref<8x8x128xf32, #tpu.memory_space<vmem>>, vector<1x8x128xf32>
    %104 = vector.shape_cast %103 : vector<1x8x128xf32> to vector<8x128xf32>
    %105 = arith.truncf %101 : vector<8x128xf32> to vector<8x128xbf16>
    %cst_42 = arith.constant dense<0.000000e+00> : vector<8x128xf32>
    %106 = tpu.matmul %105, %9, %cst_42 {dimension_numbers = #tpu.dot_dimension_numbers<[1], [0], [0], [1], [0, 0, 1, 1], [], []>} : vector<8x128xbf16>, vector<128x128xbf16>, vector<8x128xf32> -> vector<8x128xf32>
    %107 = arith.addf %104, %106 : vector<8x128xf32>
    %108 = math.tanh %107 : vector<8x128xf32>
    %109 = arith.negf %107 : vector<8x128xf32>
    %110 = math.exp %109 : vector<8x128xf32>
    %cst_43 = arith.constant 1.000000e+00 : f32
    %111 = vector.broadcast %cst_43 : f32 to vector<8x128xf32>
    %112 = arith.addf %111, %110 : vector<8x128xf32>
    %113 = arith.divf %111, %112 : vector<8x128xf32>
    %114 = arith.select %15, %108, %113 : vector<8x128xi1>, vector<8x128xf32>
    %c96_i32_44 = arith.constant 96 : i32
    %115 = tpu.dynamic_rotate %114 by %c96_i32_44 dim 1 : vector<8x128xf32>, i32 -> vector<8x128xf32>
    %c64_i32_45 = arith.constant 64 : i32
    %116 = tpu.dynamic_rotate %114 by %c64_i32_45 dim 1 : vector<8x128xf32>, i32 -> vector<8x128xf32>
    %c32_i32_46 = arith.constant 32 : i32
    %117 = tpu.dynamic_rotate %114 by %c32_i32_46 dim 1 : vector<8x128xf32>, i32 -> vector<8x128xf32>
    %118 = arith.mulf %115, %99 : vector<8x128xf32>
    %119 = arith.mulf %114, %116 : vector<8x128xf32>
    %120 = arith.addf %118, %119 : vector<8x128xf32>
    %121 = math.tanh %120 : vector<8x128xf32>
    %122 = arith.mulf %117, %121 : vector<8x128xf32>
    %c5_i32 = arith.constant 5 : i32
    %123 = arith.index_cast %c5_i32 : i32 to index
    %c0_47 = arith.constant 0 : index
    %c0_48 = arith.constant 0 : index
    %124 = vector.load %arg6[%123, %c0_47, %c0_48] : memref<8x8x128xf32, #tpu.memory_space<vmem>>, vector<1x8x128xf32>
    %125 = vector.shape_cast %124 : vector<1x8x128xf32> to vector<8x128xf32>
    %126 = arith.truncf %122 : vector<8x128xf32> to vector<8x128xbf16>
    %cst_49 = arith.constant dense<0.000000e+00> : vector<8x128xf32>
    %127 = tpu.matmul %126, %9, %cst_49 {dimension_numbers = #tpu.dot_dimension_numbers<[1], [0], [0], [1], [0, 0, 1, 1], [], []>} : vector<8x128xbf16>, vector<128x128xbf16>, vector<8x128xf32> -> vector<8x128xf32>
    %128 = arith.addf %125, %127 : vector<8x128xf32>
    %129 = math.tanh %128 : vector<8x128xf32>
    %130 = arith.negf %128 : vector<8x128xf32>
    %131 = math.exp %130 : vector<8x128xf32>
    %cst_50 = arith.constant 1.000000e+00 : f32
    %132 = vector.broadcast %cst_50 : f32 to vector<8x128xf32>
    %133 = arith.addf %132, %131 : vector<8x128xf32>
    %134 = arith.divf %132, %133 : vector<8x128xf32>
    %135 = arith.select %15, %129, %134 : vector<8x128xi1>, vector<8x128xf32>
    %c96_i32_51 = arith.constant 96 : i32
    %136 = tpu.dynamic_rotate %135 by %c96_i32_51 dim 1 : vector<8x128xf32>, i32 -> vector<8x128xf32>
    %c64_i32_52 = arith.constant 64 : i32
    %137 = tpu.dynamic_rotate %135 by %c64_i32_52 dim 1 : vector<8x128xf32>, i32 -> vector<8x128xf32>
    %c32_i32_53 = arith.constant 32 : i32
    %138 = tpu.dynamic_rotate %135 by %c32_i32_53 dim 1 : vector<8x128xf32>, i32 -> vector<8x128xf32>
    %139 = arith.mulf %136, %120 : vector<8x128xf32>
    %140 = arith.mulf %135, %137 : vector<8x128xf32>
    %141 = arith.addf %139, %140 : vector<8x128xf32>
    %142 = math.tanh %141 : vector<8x128xf32>
    %143 = arith.mulf %138, %142 : vector<8x128xf32>
    %c6_i32 = arith.constant 6 : i32
    %144 = arith.index_cast %c6_i32 : i32 to index
    %c0_54 = arith.constant 0 : index
    %c0_55 = arith.constant 0 : index
    %145 = vector.load %arg6[%144, %c0_54, %c0_55] : memref<8x8x128xf32, #tpu.memory_space<vmem>>, vector<1x8x128xf32>
    %146 = vector.shape_cast %145 : vector<1x8x128xf32> to vector<8x128xf32>
    %147 = arith.truncf %143 : vector<8x128xf32> to vector<8x128xbf16>
    %cst_56 = arith.constant dense<0.000000e+00> : vector<8x128xf32>
    %148 = tpu.matmul %147, %9, %cst_56 {dimension_numbers = #tpu.dot_dimension_numbers<[1], [0], [0], [1], [0, 0, 1, 1], [], []>} : vector<8x128xbf16>, vector<128x128xbf16>, vector<8x128xf32> -> vector<8x128xf32>
    %149 = arith.addf %146, %148 : vector<8x128xf32>
    %150 = math.tanh %149 : vector<8x128xf32>
    %151 = arith.negf %149 : vector<8x128xf32>
    %152 = math.exp %151 : vector<8x128xf32>
    %cst_57 = arith.constant 1.000000e+00 : f32
    %153 = vector.broadcast %cst_57 : f32 to vector<8x128xf32>
    %154 = arith.addf %153, %152 : vector<8x128xf32>
    %155 = arith.divf %153, %154 : vector<8x128xf32>
    %156 = arith.select %15, %150, %155 : vector<8x128xi1>, vector<8x128xf32>
    %c96_i32_58 = arith.constant 96 : i32
    %157 = tpu.dynamic_rotate %156 by %c96_i32_58 dim 1 : vector<8x128xf32>, i32 -> vector<8x128xf32>
    %c64_i32_59 = arith.constant 64 : i32
    %158 = tpu.dynamic_rotate %156 by %c64_i32_59 dim 1 : vector<8x128xf32>, i32 -> vector<8x128xf32>
    %c32_i32_60 = arith.constant 32 : i32
    %159 = tpu.dynamic_rotate %156 by %c32_i32_60 dim 1 : vector<8x128xf32>, i32 -> vector<8x128xf32>
    %160 = arith.mulf %157, %141 : vector<8x128xf32>
    %161 = arith.mulf %156, %158 : vector<8x128xf32>
    %162 = arith.addf %160, %161 : vector<8x128xf32>
    %163 = math.tanh %162 : vector<8x128xf32>
    %164 = arith.mulf %159, %163 : vector<8x128xf32>
    %c7_i32 = arith.constant 7 : i32
    %165 = arith.index_cast %c7_i32 : i32 to index
    %c0_61 = arith.constant 0 : index
    %c0_62 = arith.constant 0 : index
    %166 = vector.load %arg6[%165, %c0_61, %c0_62] : memref<8x8x128xf32, #tpu.memory_space<vmem>>, vector<1x8x128xf32>
    %167 = vector.shape_cast %166 : vector<1x8x128xf32> to vector<8x128xf32>
    %168 = arith.truncf %164 : vector<8x128xf32> to vector<8x128xbf16>
    %cst_63 = arith.constant dense<0.000000e+00> : vector<8x128xf32>
    %169 = tpu.matmul %168, %9, %cst_63 {dimension_numbers = #tpu.dot_dimension_numbers<[1], [0], [0], [1], [0, 0, 1, 1], [], []>} : vector<8x128xbf16>, vector<128x128xbf16>, vector<8x128xf32> -> vector<8x128xf32>
    %170 = arith.addf %167, %169 : vector<8x128xf32>
    %171 = math.tanh %170 : vector<8x128xf32>
    %172 = arith.negf %170 : vector<8x128xf32>
    %173 = math.exp %172 : vector<8x128xf32>
    %cst_64 = arith.constant 1.000000e+00 : f32
    %174 = vector.broadcast %cst_64 : f32 to vector<8x128xf32>
    %175 = arith.addf %174, %173 : vector<8x128xf32>
    %176 = arith.divf %174, %175 : vector<8x128xf32>
    %177 = arith.select %15, %171, %176 : vector<8x128xi1>, vector<8x128xf32>
    %c96_i32_65 = arith.constant 96 : i32
    %178 = tpu.dynamic_rotate %177 by %c96_i32_65 dim 1 : vector<8x128xf32>, i32 -> vector<8x128xf32>
    %c64_i32_66 = arith.constant 64 : i32
    %179 = tpu.dynamic_rotate %177 by %c64_i32_66 dim 1 : vector<8x128xf32>, i32 -> vector<8x128xf32>
    %c32_i32_67 = arith.constant 32 : i32
    %180 = tpu.dynamic_rotate %177 by %c32_i32_67 dim 1 : vector<8x128xf32>, i32 -> vector<8x128xf32>
    %181 = arith.mulf %178, %162 : vector<8x128xf32>
    %182 = arith.mulf %177, %179 : vector<8x128xf32>
    %183 = arith.addf %181, %182 : vector<8x128xf32>
    %184 = math.tanh %183 : vector<8x128xf32>
    %185 = arith.mulf %180, %184 : vector<8x128xf32>
    %c8_i32 = arith.constant 8 : i32
    %c0_68 = arith.constant 0 : index
    %c0_69 = arith.constant 0 : index
    %186 = vector.load %arg5[%c0_68, %c0_69] : memref<8x128xf32, #tpu.memory_space<vmem>>, vector<8x128xf32>
    tpu.vector_store %arg5[%c0_68, %c0_69], %185 {strides = array<i32>} : memref<8x128xf32, #tpu.memory_space<vmem>>, vector<8x128xf32>,
    return
  }
  func.func @transform_0(%arg0: i32) -> (i32, i32, i32) {
    %c0_i32 = arith.constant 0 : i32
    %c0_i32_0 = arith.constant 0 : i32
    %c0_i32_1 = arith.constant 0 : i32
    return %c0_i32, %arg0, %c0_i32_0 : i32, i32, i32
  }
  func.func @transform_1(%arg0: i32) -> (i32, i32) {
    %c0_i32 = arith.constant 0 : i32
    %c0_i32_0 = arith.constant 0 : i32
    %c0_i32_1 = arith.constant 0 : i32
    return %c0_i32, %c0_i32_0 : i32, i32
  }
  func.func @transform_2(%arg0: i32) -> (i32, i32) {
    %c0_i32 = arith.constant 0 : i32
    %c0_i32_0 = arith.constant 0 : i32
    %c0_i32_1 = arith.constant 0 : i32
    return %c0_i32, %c0_i32_0 : i32, i32
  }
  func.func @transform_3(%arg0: i32) -> (i32, i32) {
    %c0_i32 = arith.constant 0 : i32
    %c0_i32_0 = arith.constant 0 : i32
    %c0_i32_1 = arith.constant 0 : i32
    return %c0_i32, %c0_i32_0 : i32, i32
  }
  func.func @transform_4(%arg0: i32) -> (i32, i32) {
    %c0_i32 = arith.constant 0 : i32
    %c0_i32_0 = arith.constant 0 : i32
    return %arg0, %c0_i32 : i32, i32
  }
}

</mosaic_0001>

<llo_original>
// kernel: tpu_custom_call.1
$region0: #{tpu_custom_call.1}
  #allocation0 [shape = 'u32[]', space=smem, size = 0x4, offset = 0x4, fixed_abs, tag = 'smem constant byte address 0x4 - core index']
  #allocation1 [shape = 'u32[72,128]{1,0:T(1,128)}', space=vmem, size = 0x9000, scoped, tag = 'internal scratch']
  #allocation2 [shape = 'f32[8,8,128]{2,1,0:T(8,128)}', space=vmem, size = 0x8000, scoped, tag = 'scratch operand']
  %s0 = inlined_call_operand.hbm [shape: bf16[8,8,32], index: 0, kind: input, shape index: {}]
  %s1 = inlined_call_operand.hbm [shape: bf16[32,128], index: 1, kind: input, shape index: {}]
  %s2 = inlined_call_operand.hbm [shape: bf16[128,128], index: 2, kind: input, shape index: {}]
  %s3 = inlined_call_operand.vmem [shape: f32[1,128], index: 3, kind: input, shape index: {}]
  %s4 = inlined_call_operand.hbm [shape: f32[8,128], index: 4, kind: output, shape index: {}]
  %s5 = sld [smem:[#allocation0]]
  $region38: #{tpu_custom_call.1} parent=0
    _
  %s7 = ssub.s32 1, %s5
  %s8 = scalar_select 0, %s7, %s5
  $region1: #{tpu_custom_call.1} parent=0
    #allocation3 [shape = 'u8[16384]{0}', space=vmem, size = 0x4000, scoped, tag = 'input window, operand 0, single buffered']
    #allocation4 [shape = 's32[1]{0}', space=sflag, size = 0x4, scoped, tag = 'scoped memory for tpu_custom_call.1']
    #allocation5 [shape = 's32[1]{0}', space=sflag, size = 0x4, scoped, tag = 'scoped memory for tpu_custom_call.1']
    #allocation6 [shape = 'u8[8192]{0}', space=vmem, size = 0x2000, scoped, tag = 'input window, operand 1, single buffered']
    #allocation7 [shape = 's32[1]{0}', space=sflag, size = 0x4, scoped, tag = 'scoped memory for tpu_custom_call.1']
    #allocation8 [shape = 'u8[32768]{0}', space=vmem, size = 0x8000, scoped, tag = 'input window, operand 2, single buffered']
    #allocation9 [shape = 'u8[4096]{0}', space=vmem, size = 0x1000, scoped, tag = 'output window, operand 0, single buffered']
    %9 = vsyncpa [#allocation4], 0
    %10 = vsyncpa [#allocation7], 0
    %11 = vsyncpa [#allocation5], 0
    // Predicated region
    $region2: #{tpu_custom_call.1} parent=1 // pred_check
      _
    $region3: #{tpu_custom_call.1} parent=1 // pred_check_branch
      %13 = sbr.rel (0) target = $region5
    $region4: #{tpu_custom_call.1} parent=1 // pred_region
      %15 = vsyncadd [#allocation4], 0
      %s16 = sshll.u32 %s0, 4
      %s17 = int_to_ptr.hbm [resolvable:$true] %s16
      %s18 = sshll.u32 [#allocation3], 4
      %s19 = int_to_ptr.vmem [resolvable:$true] %s18
      %24 = dma.hbm_to_vmem [thread:$0]  %s17, 512, %s19, [#allocation4], 64, 64, 4
    $region5: #{tpu_custom_call.1} parent=1 // pred_fallthru
      _
    // Predicated region
    $region6: #{tpu_custom_call.1} parent=1 // pred_check
      _
    $region7: #{tpu_custom_call.1} parent=1 // pred_check_branch
      %26 = sbr.rel (0) target = $region9
    $region8: #{tpu_custom_call.1} parent=1 // pred_region
      %28 = vsyncadd [#allocation7], 0
      %s29 = sshll.u32 %s1, 4
      %s30 = int_to_ptr.hbm [resolvable:$true] %s29
      %s31 = sshll.u32 [#allocation6], 4
      %s32 = int_to_ptr.vmem [resolvable:$true] %s31
      %37 = dma.hbm_to_vmem [thread:$0]  %s30, 256, %s32, [#allocation7], 64, 64, 4
    $region9: #{tpu_custom_call.1} parent=1 // pred_fallthru
      _
    // Predicated region
    $region10: #{tpu_custom_call.1} parent=1 // pred_check
      _
    $region11: #{tpu_custom_call.1} parent=1 // pred_check_branch
      %39 = sbr.rel (0) target = $region13
    $region12: #{tpu_custom_call.1} parent=1 // pred_region
      %41 = vsyncadd [#allocation7], 0
      %s42 = sshll.u32 %s2, 4
      %s43 = int_to_ptr.hbm [resolvable:$true] %s42
      %s44 = sshll.u32 [#allocation8], 4
      %s45 = int_to_ptr.vmem [resolvable:$true] %s44
      %50 = dma.hbm_to_vmem [thread:$0]  %s43, 1024, %s45, [#allocation7], 64, 64, 4
    $region13: #{tpu_custom_call.1} parent=1 // pred_fallthru
      _
    // Predicated region
    $region14: #{tpu_custom_call.1} parent=1 // pred_check
      _
    $region15: #{tpu_custom_call.1} parent=1 // pred_check_branch
      %52 = sbr.rel (0) target = $region17
    $region16: #{tpu_custom_call.1} parent=1 // pred_region
      _
    $region17: #{tpu_custom_call.1} parent=1 // pred_fallthru
      _
    // Predicated region
    $region18: #{tpu_custom_call.1} parent=1 // pred_check
      _
    $region19: #{tpu_custom_call.1} parent=1 // pred_check_branch
      %54 = sbr.rel (0) target = $region21
    $region20: #{tpu_custom_call.1} parent=1 // pred_region
      %56 = dma.done [#allocation4], 512
    $region21: #{tpu_custom_call.1} parent=1 // pred_fallthru
      _
    // Predicated region
    $region22: #{tpu_custom_call.1} parent=1 // pred_check
      _
    $region23: #{tpu_custom_call.1} parent=1 // pred_check_branch
      %58 = sbr.rel (0) target = $region25
    $region24: #{tpu_custom_call.1} parent=1 // pred_region
      %60 = dma.done [#allocation7], 256
    $region25: #{tpu_custom_call.1} parent=1 // pred_fallthru
      _
    // Predicated region
    $region26: #{tpu_custom_call.1} parent=1 // pred_check
      _
    $region27: #{tpu_custom_call.1} parent=1 // pred_check_branch
      %62 = sbr.rel (0) target = $region29
    $region28: #{tpu_custom_call.1} parent=1 // pred_region
      %64 = dma.done [#allocation7], 1024
    $region29: #{tpu_custom_call.1} parent=1 // pred_fallthru
      _
    %v66 = vld [vmem:[#allocation3] sm:$0xf]
    %v67 = vld [vmem:[#allocation3 + $0x4] sm:$0xf]
    %v68 = vld [vmem:[#allocation3 + $0x8] sm:$0xf]
    %v69 = vld [vmem:[#allocation3 + $0xc] sm:$0xf]
    %v70 = vld [vmem:[#allocation3 + $0x10] sm:$0xf]
    %v71 = vld [vmem:[#allocation3 + $0x14] sm:$0xf]
    %v72 = vld [vmem:[#allocation3 + $0x18] sm:$0xf]
    %v73 = vld [vmem:[#allocation3 + $0x1c] sm:$0xf]
    %v74 = vld [vmem:[#allocation6] sm:$0xf]
    %v75 = vld [vmem:[#allocation6 + $0x4] sm:$0xf]
    %v76 = vld [vmem:[#allocation6 + $0x8] sm:$0xf]
    %v77 = vld [vmem:[#allocation6 + $0xc] sm:$0xf]
    %v78 = vld [vmem:[%s3] sm:$0x1]
    %v80 = vperm.slane %v78, 0
    %v90 = vunpack.c.l.b16 %v66
    %v91 = vunpack.c.l.b16 %v67
    %v92 = vunpack.c.l.b16 %v68
    %v93 = vunpack.c.l.b16 %v69
    %v94 = vunpack.c.l.b16 %v70
    %v95 = vunpack.c.l.b16 %v71
    %v96 = vunpack.c.l.b16 %v72
    %v97 = vunpack.c.l.b16 %v73
    %v98 = vpack.c.b16 %v91, %v90
    %v99 = vpack.c.b16 %v93, %v92
    %v100 = vpack.c.b16 %v95, %v94
    %v101 = vpack.c.b16 %v97, %v96
    %v106 = vunpack.c.l.b16 %v74
    %v107 = vunpack.c.l.b16 %v75
    %v108 = vunpack.c.l.b16 %v76
    %v109 = vunpack.c.l.b16 %v77
    %v110 = vpack.c.b16 %v107, %v106
    %v111 = vpack.c.b16 %v109, %v108
    %vm114 = vcmask 261120
    %v116 = vsel %vm114, %v98, 0
    %v119 = vsel %vm114, %v99, 0
    %v122 = vsel %vm114, %v100, 0
    %v125 = vsel %vm114, %v101, 0
    %127 = vmatpush.bf16.msra.mxu0 0
    %128 = vmatpush.bf16.msra.mxu0 0
    %129 = vmatpush.bf16.msra.mxu0 0
    %130 = vmatpush.bf16.msra.mxu0 0
    %131 = vmatpush.bf16.msra.mxu0 0
    %132 = vmatpush.bf16.msra.mxu0 0
    %133 = vmatpush.bf16.msra.mxu0 %v111
    %134 = vmatpush.bf16.msra.mxu0 %v110
    %135 = vmatmul.bf16.gmra.mxu0 %v116
    %v136 = vpop.f32.mrf.mxu0
    %v137 = vadd.f32 %v80, %v136
    %v138 = vpop.f32.mrf.mxu0
    %v139 = vadd.f32 %v80, %v138
    %140 = vmatmul.bf16.gmra.mxu0 %v119
    %v141 = vpop.f32.mrf.mxu0
    %v142 = vadd.f32 %v80, %v141
    %v143 = vpop.f32.mrf.mxu0
    %v144 = vadd.f32 %v80, %v143
    %145 = vmatmul.bf16.gmra.mxu0 %v122
    %v146 = vpop.f32.mrf.mxu0
    %v147 = vadd.f32 %v80, %v146
    %v148 = vpop.f32.mrf.mxu0
    %v149 = vadd.f32 %v80, %v148
    %150 = vmatmul.bf16.gmra.mxu0 %v125
    %v151 = vpop.f32.mrf.mxu0
    %v152 = vadd.f32 %v80, %v151
    %v153 = vpop.f32.mrf.mxu0
    %v154 = vadd.f32 %v80, %v153
    %155 = vdwg.mxu0
    %156 = vst [vmem:[#allocation2] sm:$0xff] %v137
    %157 = vst [vmem:[#allocation2 + $0x8] sm:$0xff] %v139
    %158 = vst [vmem:[#allocation2 + $0x10] sm:$0xff] %v142
    %159 = vst [vmem:[#allocation2 + $0x18] sm:$0xff] %v144
    %160 = vst [vmem:[#allocation2 + $0x20] sm:$0xff] %v147
    %161 = vst [vmem:[#allocation2 + $0x28] sm:$0xff] %v149
    %162 = vst [vmem:[#allocation2 + $0x30] sm:$0xff] %v152
    %163 = vst [vmem:[#allocation2 + $0x38] sm:$0xff] %v154
    %v164 = vld [vmem:[#allocation8] sm:$0xf]
    %v165 = vld [vmem:[#allocation8 + $0x4] sm:$0xf]
    %v166 = vld [vmem:[#allocation8 + $0x8] sm:$0xf]
    %v167 = vld [vmem:[#allocation8 + $0xc] sm:$0xf]
    %v168 = vld [vmem:[#allocation8 + $0x10] sm:$0xf]
    %v169 = vld [vmem:[#allocation8 + $0x14] sm:$0xf]
    %v170 = vld [vmem:[#allocation8 + $0x18] sm:$0xf]
    %v171 = vld [vmem:[#allocation8 + $0x1c] sm:$0xf]
    %v172 = vld [vmem:[#allocation8 + $0x20] sm:$0xf]
    %v173 = vld [vmem:[#allocation8 + $0x24] sm:$0xf]
    %v174 = vld [vmem:[#allocation8 + $0x28] sm:$0xf]
    %v175 = vld [vmem:[#allocation8 + $0x2c] sm:$0xf]
    %v176 = vld [vmem:[#allocation8 + $0x30] sm:$0xf]
    %v177 = vld [vmem:[#allocation8 + $0x34] sm:$0xf]
    %v178 = vld [vmem:[#allocation8 + $0x38] sm:$0xf]
    %v179 = vld [vmem:[#allocation8 + $0x3c] sm:$0xf]
    %v180 = vlaneseq
    %v181 = vand.u32 %v180, 127
    %vm182 = vcmp.ge.s32.totalorder %v181, 64
    %vm183 = vcmp.lt.s32.totalorder %v181, 96
    %vm184 = vmand %vm182, %vm183
    %v185 = vld [vmem:[#allocation2] sm:$0xff]
    %v202 = vunpack.c.l.b16 %v164
    %v203 = vunpack.c.l.b16 %v165
    %v204 = vunpack.c.l.b16 %v166
    %v205 = vunpack.c.l.b16 %v167
    %v206 = vunpack.c.l.b16 %v168
    %v207 = vunpack.c.l.b16 %v169
    %v208 = vunpack.c.l.b16 %v170
    %v209 = vunpack.c.l.b16 %v171
    %v210 = vunpack.c.l.b16 %v172
    %v211 = vunpack.c.l.b16 %v173
    %v212 = vunpack.c.l.b16 %v174
    %v213 = vunpack.c.l.b16 %v175
    %v214 = vunpack.c.l.b16 %v176
    %v215 = vunpack.c.l.b16 %v177
    %v216 = vunpack.c.l.b16 %v178
    %v217 = vunpack.c.l.b16 %v179
    %v218 = vpack.c.b16 %v203, %v202
    %v219 = vpack.c.b16 %v205, %v204
    %v220 = vpack.c.b16 %v207, %v206
    %v221 = vpack.c.b16 %v209, %v208
    %v222 = vpack.c.b16 %v211, %v210
    %v223 = vpack.c.b16 %v213, %v212
    %v224 = vpack.c.b16 %v215, %v214
    %v225 = vpack.c.b16 %v217, %v216
    %234 = vmatpush.bf16.msra.mxu0 %v225
    %235 = vmatpush.bf16.msra.mxu0 %v224
    %236 = vmatpush.bf16.msra.mxu0 %v223
    %237 = vmatpush.bf16.msra.mxu0 %v222
    %238 = vmatpush.bf16.msra.mxu0 %v221
    %239 = vmatpush.bf16.msra.mxu0 %v220
    %240 = vmatpush.bf16.msra.mxu0 %v219
    %241 = vmatpush.bf16.msra.mxu0 %v218
    %242 = vmatmul.bf16.gmra.mxu0 0
    %v243 = vpop.f32.mrf.mxu0
    %v244 = vadd.f32 0.0, %v243
    %v245 = vpop.f32.mrf.mxu0
    %246 = vdwg.mxu0
    %v247 = vadd.f32 %v185, %v244
    %v248 = vtanh.pop %v247
    %v249 = vxor.u32 %v247, 2147483648
    %v250 = vmul.f32 %v249, 1.442695
    %v251 = vpow.pop %v250
    %v252 = vadd.f32 %v251, 1.0
    %v253 = vrcp.pop %v252
    %v254 = vmul.f32 %v252, %v253
    %v255 = vsub.f32 1.0, %v254
    %v256 = vmul.f32 %v253, %v255
    %v257 = vadd.f32 %v253, %v256
    %vm258 = vweird.f32 %v252
    %vm259 = vweird.f32 %v253
    %vm260 = vmor %vm258, %vm259
    %v261 = vsel %vm260, %v253, %v257
    %v262 = vand.u32 2147483647, %v252
    %vm263 = vcmp.eq.f32.partialorder %v262, 8.507059e+37
    %v264 = vand.u32 %v252, 2147483648
    %v265 = vor.u32 1.1754944e-38, %v264
    %v266 = vsel %vm263, %v265, %v261
    %v267 = vmul.f32 1.0, %v266
    %v268 = vsel %vm184, %v248, %v267
    %269 = vrot.lane.b32.xlu0 %v268, 96
    %v270 = vpop.permute.xlu0 %269
    %271 = vrot.lane.b32.xlu0 %v268, 64
    %v272 = vpop.permute.xlu0 %271
    %273 = vrot.lane.b32.xlu0 %v268, 32
    %v274 = vpop.permute.xlu0 %273
    %v275 = vmul.f32 %v270, 0.0
    %v276 = vmul.f32 %v268, %v272
    %v277 = vadd.f32 %v275, %v276
    %v278 = vtanh.pop %v277
    %v279 = vmul.f32 %v274, %v278
    %s280 = scalar_lea.vmem [#allocation2], 8
    %v281 = vld [vmem:[%s280] sm:$0xff]
    %v282 = vpack.c.bf16 %v279, %v279
    %283 = vmatpush.bf16.msra.mxu0 %v225
    %284 = vmatpush.bf16.msra.mxu0 %v224
    %285 = vmatpush.bf16.msra.mxu0 %v223
    %286 = vmatpush.bf16.msra.mxu0 %v222
    %287 = vmatpush.bf16.msra.mxu0 %v221
    %288 = vmatpush.bf16.msra.mxu0 %v220
    %289 = vmatpush.bf16.msra.mxu0 %v219
    %290 = vmatpush.bf16.msra.mxu0 %v218
    %291 = vmatmul.bf16.gmra.mxu0 %v282
    %v292 = vpop.f32.mrf.mxu0
    %v293 = vadd.f32 0.0, %v292
    %v294 = vpop.f32.mrf.mxu0
    %295 = vdwg.mxu0
    %v296 = vadd.f32 %v281, %v293
    %v297 = vtanh.pop %v296
    %v298 = vxor.u32 %v296, 2147483648
    %v299 = vmul.f32 %v298, 1.442695
    %v300 = vpow.pop %v299
    %v301 = vadd.f32 %v300, 1.0
    %v302 = vrcp.pop %v301
    %v303 = vmul.f32 %v301, %v302
    %v304 = vsub.f32 1.0, %v303
    %v305 = vmul.f32 %v302, %v304
    %v306 = vadd.f32 %v302, %v305
    %vm307 = vweird.f32 %v301
    %vm308 = vweird.f32 %v302
    %vm309 = vmor %vm307, %vm308
    %v310 = vsel %vm309, %v302, %v306
    %v311 = vand.u32 2147483647, %v301
    %vm312 = vcmp.eq.f32.partialorder %v311, 8.507059e+37
    %v313 = vand.u32 %v301, 2147483648
    %v314 = vor.u32 1.1754944e-38, %v313
    %v315 = vsel %vm312, %v314, %v310
    %v316 = vmul.f32 1.0, %v315
    %v317 = vsel %vm184, %v297, %v316
    %318 = vrot.lane.b32.xlu0 %v317, 96
    %v319 = vpop.permute.xlu0 %318
    %320 = vrot.lane.b32.xlu0 %v317, 64
    %v321 = vpop.permute.xlu0 %320
    %322 = vrot.lane.b32.xlu0 %v317, 32
    %v323 = vpop.permute.xlu0 %322
    %v324 = vmul.f32 %v319, %v277
    %v325 = vmul.f32 %v317, %v321
    %v326 = vadd.f32 %v324, %v325
    %v327 = vtanh.pop %v326
    %v328 = vmul.f32 %v323, %v327
    %s329 = scalar_lea.vmem [#allocation2], 16
    %v330 = vld [vmem:[%s329] sm:$0xff]
    %v331 = vpack.c.bf16 %v328, %v328
    %332 = vmatpush.bf16.msra.mxu0 %v225
    %333 = vmatpush.bf16.msra.mxu0 %v224
    %334 = vmatpush.bf16.msra.mxu0 %v223
    %335 = vmatpush.bf16.msra.mxu0 %v222
    %336 = vmatpush.bf16.msra.mxu0 %v221
    %337 = vmatpush.bf16.msra.mxu0 %v220
    %338 = vmatpush.bf16.msra.mxu0 %v219
    %339 = vmatpush.bf16.msra.mxu0 %v218
    %340 = vmatmul.bf16.gmra.mxu0 %v331
    %v341 = vpop.f32.mrf.mxu0
    %v342 = vadd.f32 0.0, %v341
    %v343 = vpop.f32.mrf.mxu0
    %344 = vdwg.mxu0
    %v345 = vadd.f32 %v330, %v342
    %v346 = vtanh.pop %v345
    %v347 = vxor.u32 %v345, 2147483648
    %v348 = vmul.f32 %v347, 1.442695
    %v349 = vpow.pop %v348
    %v350 = vadd.f32 %v349, 1.0
    %v351 = vrcp.pop %v350
    %v352 = vmul.f32 %v350, %v351
    %v353 = vsub.f32 1.0, %v352
    %v354 = vmul.f32 %v351, %v353
    %v355 = vadd.f32 %v351, %v354
    %vm356 = vweird.f32 %v350
    %vm357 = vweird.f32 %v351
    %vm358 = vmor %vm356, %vm357
    %v359 = vsel %vm358, %v351, %v355
    %v360 = vand.u32 2147483647, %v350
    %vm361 = vcmp.eq.f32.partialorder %v360, 8.507059e+37
    %v362 = vand.u32 %v350, 2147483648
    %v363 = vor.u32 1.1754944e-38, %v362
    %v364 = vsel %vm361, %v363, %v359
    %v365 = vmul.f32 1.0, %v364
    %v366 = vsel %vm184, %v346, %v365
    %367 = vrot.lane.b32.xlu0 %v366, 96
    %v368 = vpop.permute.xlu0 %367
    %369 = vrot.lane.b32.xlu0 %v366, 64
    %v370 = vpop.permute.xlu0 %369
    %371 = vrot.lane.b32.xlu0 %v366, 32
    %v372 = vpop.permute.xlu0 %371
    %v373 = vmul.f32 %v368, %v326
    %v374 = vmul.f32 %v366, %v370
    %v375 = vadd.f32 %v373, %v374
    %v376 = vtanh.pop %v375
    %v377 = vmul.f32 %v372, %v376
    %s378 = scalar_lea.vmem [#allocation2], 24
    %v379 = vld [vmem:[%s378] sm:$0xff]
    %v380 = vpack.c.bf16 %v377, %v377
    %381 = vmatpush.bf16.msra.mxu0 %v225
    %382 = vmatpush.bf16.msra.mxu0 %v224
    %383 = vmatpush.bf16.msra.mxu0 %v223
    %384 = vmatpush.bf16.msra.mxu0 %v222
    %385 = vmatpush.bf16.msra.mxu0 %v221
    %386 = vmatpush.bf16.msra.mxu0 %v220
    %387 = vmatpush.bf16.msra.mxu0 %v219
    %388 = vmatpush.bf16.msra.mxu0 %v218
    %389 = vmatmul.bf16.gmra.mxu0 %v380
    %v390 = vpop.f32.mrf.mxu0
    %v391 = vadd.f32 0.0, %v390
    %v392 = vpop.f32.mrf.mxu0
    %393 = vdwg.mxu0
    %v394 = vadd.f32 %v379, %v391
    %v395 = vtanh.pop %v394
    %v396 = vxor.u32 %v394, 2147483648
    %v397 = vmul.f32 %v396, 1.442695
    %v398 = vpow.pop %v397
    %v399 = vadd.f32 %v398, 1.0
    %v400 = vrcp.pop %v399
    %v401 = vmul.f32 %v399, %v400
    %v402 = vsub.f32 1.0, %v401
    %v403 = vmul.f32 %v400, %v402
    %v404 = vadd.f32 %v400, %v403
    %vm405 = vweird.f32 %v399
    %vm406 = vweird.f32 %v400
    %vm407 = vmor %vm405, %vm406
    %v408 = vsel %vm407, %v400, %v404
    %v409 = vand.u32 2147483647, %v399
    %vm410 = vcmp.eq.f32.partialorder %v409, 8.507059e+37
    %v411 = vand.u32 %v399, 2147483648
    %v412 = vor.u32 1.1754944e-38, %v411
    %v413 = vsel %vm410, %v412, %v408
    %v414 = vmul.f32 1.0, %v413
    %v415 = vsel %vm184, %v395, %v414
    %416 = vrot.lane.b32.xlu0 %v415, 96
    %v417 = vpop.permute.xlu0 %416
    %418 = vrot.lane.b32.xlu0 %v415, 64
    %v419 = vpop.permute.xlu0 %418
    %420 = vrot.lane.b32.xlu0 %v415, 32
    %v421 = vpop.permute.xlu0 %420
    %v422 = vmul.f32 %v417, %v375
    %v423 = vmul.f32 %v415, %v419
    %v424 = vadd.f32 %v422, %v423
    %v425 = vtanh.pop %v424
    %v426 = vmul.f32 %v421, %v425
    %s427 = scalar_lea.vmem [#allocation2], 32
    %v428 = vld [vmem:[%s427] sm:$0xff]
    %v429 = vpack.c.bf16 %v426, %v426
    %430 = vmatpush.bf16.msra.mxu0 %v225
    %431 = vmatpush.bf16.msra.mxu0 %v224
    %432 = vmatpush.bf16.msra.mxu0 %v223
    %433 = vmatpush.bf16.msra.mxu0 %v222
    %434 = vmatpush.bf16.msra.mxu0 %v221
    %435 = vmatpush.bf16.msra.mxu0 %v220
    %436 = vmatpush.bf16.msra.mxu0 %v219
    %437 = vmatpush.bf16.msra.mxu0 %v218
    %438 = vmatmul.bf16.gmra.mxu0 %v429
    %v439 = vpop.f32.mrf.mxu0
    %v440 = vadd.f32 0.0, %v439
    %v441 = vpop.f32.mrf.mxu0
    %442 = vdwg.mxu0
    %v443 = vadd.f32 %v428, %v440
    %v444 = vtanh.pop %v443
    %v445 = vxor.u32 %v443, 2147483648
    %v446 = vmul.f32 %v445, 1.442695
    %v447 = vpow.pop %v446
    %v448 = vadd.f32 %v447, 1.0
    %v449 = vrcp.pop %v448
    %v450 = vmul.f32 %v448, %v449
    %v451 = vsub.f32 1.0, %v450
    %v452 = vmul.f32 %v449, %v451
    %v453 = vadd.f32 %v449, %v452
    %vm454 = vweird.f32 %v448
    %vm455 = vweird.f32 %v449
    %vm456 = vmor %vm454, %vm455
    %v457 = vsel %vm456, %v449, %v453
    %v458 = vand.u32 2147483647, %v448
    %vm459 = vcmp.eq.f32.partialorder %v458, 8.507059e+37
    %v460 = vand.u32 %v448, 2147483648
    %v461 = vor.u32 1.1754944e-38, %v460
    %v462 = vsel %vm459, %v461, %v457
    %v463 = vmul.f32 1.0, %v462
    %v464 = vsel %vm184, %v444, %v463
    %465 = vrot.lane.b32.xlu0 %v464, 96
    %v466 = vpop.permute.xlu0 %465
    %467 = vrot.lane.b32.xlu0 %v464, 64
    %v468 = vpop.permute.xlu0 %467
    %469 = vrot.lane.b32.xlu0 %v464, 32
    %v470 = vpop.permute.xlu0 %469
    %v471 = vmul.f32 %v466, %v424
    %v472 = vmul.f32 %v464, %v468
    %v473 = vadd.f32 %v471, %v472
    %v474 = vtanh.pop %v473
    %v475 = vmul.f32 %v470, %v474
    %s476 = scalar_lea.vmem [#allocation2], 40
    %v477 = vld [vmem:[%s476] sm:$0xff]
    %v478 = vpack.c.bf16 %v475, %v475
    %479 = vmatpush.bf16.msra.mxu0 %v225
    %480 = vmatpush.bf16.msra.mxu0 %v224
    %481 = vmatpush.bf16.msra.mxu0 %v223
    %482 = vmatpush.bf16.msra.mxu0 %v222
    %483 = vmatpush.bf16.msra.mxu0 %v221
    %484 = vmatpush.bf16.msra.mxu0 %v220
    %485 = vmatpush.bf16.msra.mxu0 %v219
    %486 = vmatpush.bf16.msra.mxu0 %v218
    %487 = vmatmul.bf16.gmra.mxu0 %v478
    %v488 = vpop.f32.mrf.mxu0
    %v489 = vadd.f32 0.0, %v488
    %v490 = vpop.f32.mrf.mxu0
    %491 = vdwg.mxu0
    %v492 = vadd.f32 %v477, %v489
    %v493 = vtanh.pop %v492
    %v494 = vxor.u32 %v492, 2147483648
    %v495 = vmul.f32 %v494, 1.442695
    %v496 = vpow.pop %v495
    %v497 = vadd.f32 %v496, 1.0
    %v498 = vrcp.pop %v497
    %v499 = vmul.f32 %v497, %v498
    %v500 = vsub.f32 1.0, %v499
    %v501 = vmul.f32 %v498, %v500
    %v502 = vadd.f32 %v498, %v501
    %vm503 = vweird.f32 %v497
    %vm504 = vweird.f32 %v498
    %vm505 = vmor %vm503, %vm504
    %v506 = vsel %vm505, %v498, %v502
    %v507 = vand.u32 2147483647, %v497
    %vm508 = vcmp.eq.f32.partialorder %v507, 8.507059e+37
    %v509 = vand.u32 %v497, 2147483648
    %v510 = vor.u32 1.1754944e-38, %v509
    %v511 = vsel %vm508, %v510, %v506
    %v512 = vmul.f32 1.0, %v511
    %v513 = vsel %vm184, %v493, %v512
    %514 = vrot.lane.b32.xlu0 %v513, 96
    %v515 = vpop.permute.xlu0 %514
    %516 = vrot.lane.b32.xlu0 %v513, 64
    %v517 = vpop.permute.xlu0 %516
    %518 = vrot.lane.b32.xlu0 %v513, 32
    %v519 = vpop.permute.xlu0 %518
    %v520 = vmul.f32 %v515, %v473
    %v521 = vmul.f32 %v513, %v517
    %v522 = vadd.f32 %v520, %v521
    %v523 = vtanh.pop %v522
    %v524 = vmul.f32 %v519, %v523
    %s525 = scalar_lea.vmem [#allocation2], 48
    %v526 = vld [vmem:[%s525] sm:$0xff]
    %v527 = vpack.c.bf16 %v524, %v524
    %528 = vmatpush.bf16.msra.mxu0 %v225
    %529 = vmatpush.bf16.msra.mxu0 %v224
    %530 = vmatpush.bf16.msra.mxu0 %v223
    %531 = vmatpush.bf16.msra.mxu0 %v222
    %532 = vmatpush.bf16.msra.mxu0 %v221
    %533 = vmatpush.bf16.msra.mxu0 %v220
    %534 = vmatpush.bf16.msra.mxu0 %v219
    %535 = vmatpush.bf16.msra.mxu0 %v218
    %536 = vmatmul.bf16.gmra.mxu0 %v527
    %v537 = vpop.f32.mrf.mxu0
    %v538 = vadd.f32 0.0, %v537
    %v539 = vpop.f32.mrf.mxu0
    %540 = vdwg.mxu0
    %v541 = vadd.f32 %v526, %v538
    %v542 = vtanh.pop %v541
    %v543 = vxor.u32 %v541, 2147483648
    %v544 = vmul.f32 %v543, 1.442695
    %v545 = vpow.pop %v544
    %v546 = vadd.f32 %v545, 1.0
    %v547 = vrcp.pop %v546
    %v548 = vmul.f32 %v546, %v547
    %v549 = vsub.f32 1.0, %v548
    %v550 = vmul.f32 %v547, %v549
    %v551 = vadd.f32 %v547, %v550
    %vm552 = vweird.f32 %v546
    %vm553 = vweird.f32 %v547
    %vm554 = vmor %vm552, %vm553
    %v555 = vsel %vm554, %v547, %v551
    %v556 = vand.u32 2147483647, %v546
    %vm557 = vcmp.eq.f32.partialorder %v556, 8.507059e+37
    %v558 = vand.u32 %v546, 2147483648
    %v559 = vor.u32 1.1754944e-38, %v558
    %v560 = vsel %vm557, %v559, %v555
    %v561 = vmul.f32 1.0, %v560
    %v562 = vsel %vm184, %v542, %v561
    %563 = vrot.lane.b32.xlu0 %v562, 96
    %v564 = vpop.permute.xlu0 %563
    %565 = vrot.lane.b32.xlu0 %v562, 64
    %v566 = vpop.permute.xlu0 %565
    %567 = vrot.lane.b32.xlu0 %v562, 32
    %v568 = vpop.permute.xlu0 %567
    %v569 = vmul.f32 %v564, %v522
    %v570 = vmul.f32 %v562, %v566
    %v571 = vadd.f32 %v569, %v570
    %v572 = vtanh.pop %v571
    %v573 = vmul.f32 %v568, %v572
    %s574 = scalar_lea.vmem [#allocation2], 56
    %v575 = vld [vmem:[%s574] sm:$0xff]
    %v576 = vpack.c.bf16 %v573, %v573
    %577 = vmatpush.bf16.msra.mxu0 %v225
    %578 = vmatpush.bf16.msra.mxu0 %v224
    %579 = vmatpush.bf16.msra.mxu0 %v223
    %580 = vmatpush.bf16.msra.mxu0 %v222
    %581 = vmatpush.bf16.msra.mxu0 %v221
    %582 = vmatpush.bf16.msra.mxu0 %v220
    %583 = vmatpush.bf16.msra.mxu0 %v219
    %584 = vmatpush.bf16.msra.mxu0 %v218
    %585 = vmatmul.bf16.gmra.mxu0 %v576
    %v586 = vpop.f32.mrf.mxu0
    %v587 = vadd.f32 0.0, %v586
    %v588 = vpop.f32.mrf.mxu0
    %589 = vdwg.mxu0
    %v590 = vadd.f32 %v575, %v587
    %v591 = vtanh.pop %v590
    %v592 = vxor.u32 %v590, 2147483648
    %v593 = vmul.f32 %v592, 1.442695
    %v594 = vpow.pop %v593
    %v595 = vadd.f32 %v594, 1.0
    %v596 = vrcp.pop %v595
    %v597 = vmul.f32 %v595, %v596
    %v598 = vsub.f32 1.0, %v597
    %v599 = vmul.f32 %v596, %v598
    %v600 = vadd.f32 %v596, %v599
    %vm601 = vweird.f32 %v595
    %vm602 = vweird.f32 %v596
    %vm603 = vmor %vm601, %vm602
    %v604 = vsel %vm603, %v596, %v600
    %v605 = vand.u32 2147483647, %v595
    %vm606 = vcmp.eq.f32.partialorder %v605, 8.507059e+37
    %v607 = vand.u32 %v595, 2147483648
    %v608 = vor.u32 1.1754944e-38, %v607
    %v609 = vsel %vm606, %v608, %v604
    %v610 = vmul.f32 1.0, %v609
    %v611 = vsel %vm184, %v591, %v610
    %612 = vrot.lane.b32.xlu0 %v611, 96
    %v613 = vpop.permute.xlu0 %612
    %614 = vrot.lane.b32.xlu0 %v611, 64
    %v615 = vpop.permute.xlu0 %614
    %616 = vrot.lane.b32.xlu0 %v611, 32
    %v617 = vpop.permute.xlu0 %616
    %v618 = vmul.f32 %v613, %v571
    %v619 = vmul.f32 %v611, %v615
    %v620 = vadd.f32 %v618, %v619
    %v621 = vtanh.pop %v620
    %v622 = vmul.f32 %v617, %v621
    %623 = vst [vmem:[#allocation9] sm:$0xff] %v622
    // Predicated region
    $region30: #{tpu_custom_call.1} parent=1 // pred_check
      _
    $region31: #{tpu_custom_call.1} parent=1 // pred_check_branch
      %625 = sbr.rel (0) target = $region33
    $region32: #{tpu_custom_call.1} parent=1 // pred_region
      %627 = vsyncadd [#allocation5], 0
      %s629 = sshll.u32 [#allocation9], 4
      %s630 = int_to_ptr.vmem [resolvable:$true] %s629
      %s631 = sshll.u32 %s4, 4
      %s632 = int_to_ptr.hbm [resolvable:$true] %s631
      %634 = dma.vmem_to_hbm [thread:$0]  %s630, 128, %s632, [#allocation5]
    $region33: #{tpu_custom_call.1} parent=1 // pred_fallthru
      _
    // Predicated region
    $region34: #{tpu_custom_call.1} parent=1 // pred_check
      _
    $region35: #{tpu_custom_call.1} parent=1 // pred_check_branch
      %636 = sbr.rel (0) target = $region37
    $region36: #{tpu_custom_call.1} parent=1 // pred_region
      %638 = dma.done [#allocation5], 128
    $region37: #{tpu_custom_call.1} parent=1 // pred_fallthru
      _
    %639 = vsyncpa [#allocation4], 1
    %640 = vsyncpa [#allocation7], 1
    %641 = vsyncpa [#allocation5], 1

</llo_original>
